<compile_context>
chip_gen: v6e
topology: v6e:2x2x1
jax: 0.10.0
libtpu: 0.0.40
codegen_flags: <defaults>
</compile_context>

<pallas_src>
import functools

import jax
import jax.numpy as jnp
from jax import lax
from jax.experimental import pallas as pl
from jax.experimental.pallas import tpu as pltpu


def _ecoc_partial_kernel(target_ref, x_ref, out_ref, *, batch, block_b, num_tiles, ragged):
    # target_ref: (1, bm)    int32    VMEM  (class index per batch column)
    # x_ref:      (C1, bm)   f32/bf16 VMEM  (outputs, transposed: codeword dim on sublanes)
    # out_ref:    (1, 8, 128) f32     VMEM  (this tile's partial sum, broadcast over the slab)
    i = pl.program_id(0)
    x = x_ref[...].astype(jnp.float32)                       # (C1, bm) f32
    t = target_ref[...]                                      # (1, bm) int32
    code_idx = lax.broadcasted_iota(jnp.int32, x.shape, 0)   # codeword position j (sublanes)
    # target_class[t][j] == 1 iff j < t  ->  diff = x - 1 there, x elsewhere (single select).
    d = jnp.where(code_idx < t, x - 1.0, x)

    def _write(v):
        out_ref[...] = jnp.full(out_ref.shape, jnp.sum(v * v), dtype=jnp.float32)

    if not ragged:
        _write(d)
    else:
        last = num_tiles - 1

        @pl.when(i != last)
        def _full_tile():
            _write(d)

        @pl.when(i == last)
        def _edge_tile():
            # Mask batch columns past B (their block data is unspecified) before squaring.
            col = lax.broadcasted_iota(jnp.int32, d.shape, 1) + i * block_b
            _write(jnp.where(col < batch, d, 0.0))


def ecoc_loss(output: jnp.ndarray, target: jnp.ndarray, num_classes: int,
              *, block_b: int | None = None,
              vmem_budget_bytes: int = 24 * 1024 * 1024) -> jnp.ndarray:
    """output: (B, num_classes-1) float (f32/bf16), target: (B,) int -> scalar f32 loss."""
    B, C1 = output.shape
    assert C1 == num_classes - 1, (C1, num_classes)
    lane = 128

    # Auto tile size: largest bm whose double-buffered (x + target) blocks fit the budget.
    itemsize = jnp.dtype(output.dtype).itemsize
    sub = 8 * (4 // itemsize)                         # sublanes per vreg for this dtype
    padded_rows = pl.cdiv(C1, sub) * sub              # 9 -> 16 sublanes (f32 and bf16)
    x_bytes_per_col = padded_rows * itemsize          # VMEM bytes / batch column, x block
    t_bytes_per_col = 8 * 4                           # (1, bm) int32 pads to 8 sublanes
    bm_auto = vmem_budget_bytes // (2 * (x_bytes_per_col + t_bytes_per_col))

    bm = bm_auto if block_b is None else block_b
    bm = max(lane, (bm // lane) * lane)               # force lane (128) divisibility
    bm = min(bm, pl.cdiv(B, lane) * lane)             # never larger than the rounded batch

    num_tiles = pl.cdiv(B, bm)
    ragged = (B % bm) != 0

    # Lane-dense layout: batch on lanes, the C1 codeword positions on sublanes.
    # TODO(synk): this transpose is one extra HBM read+write of the activations; produce the
    # logits already transposed upstream to reach the 1-pass HBM roofline.
    x_t = output.T                                    # (C1, B), native dtype (bf16 stays bf16)
    tgt = target.astype(jnp.int32).reshape(1, B)      # reshape: no data movement

    kernel = functools.partial(_ecoc_partial_kernel, batch=B, block_b=bm,
                               num_tiles=num_tiles, ragged=ragged)

    partials = pl.pallas_call(
        kernel,
        out_shape=jax.ShapeDtypeStruct((num_tiles, 8, 128), jnp.float32),
        grid_spec=pltpu.PrefetchScalarGridSpec(
            num_scalar_prefetch=0,
            grid=(num_tiles,),
            in_specs=[
                pl.BlockSpec((1, bm), lambda i: (0, i)),        # target row (lane-dense)
                pl.BlockSpec((C1, bm), lambda i: (0, i)),       # transposed outputs
            ],
            out_specs=pl.BlockSpec((1, 8, 128), lambda i: (i, 0, 0)),  # per-tile partial
        ),
        compiler_params=pltpu.CompilerParams(
            dimension_semantics=("parallel",),       # no cross-step state -> both v7x TCs run
            vmem_limit_bytes=32 * 1024 * 1024,       # explicit: v5e scoped default is 16 MiB
        ),
    )(tgt, x_t)
    return jnp.sum(partials[:, 0, 0])


def make_ecoc_codebook(num_classes: int) -> jnp.ndarray:
    """Reference replica of the PyTorch buffer (lower-triangular ones)."""
    rows = jnp.arange(num_classes, dtype=jnp.int32)[:, None]
    cols = jnp.arange(num_classes - 1, dtype=jnp.int32)[None, :]
    return (cols < rows).astype(jnp.float32)          # (NC, NC-1)


if __name__ == "__main__":
    num_classes = 10
    key = jax.random.PRNGKey(0)
    codebook = make_ecoc_codebook(num_classes)
    k1, k2, k3, k4, k5 = jax.random.split(key, 5)

    # Case 1: tiny batch, single ragged tile (in-kernel masking path).
    out_small = jax.random.normal(k1, (8, num_classes - 1), dtype=jnp.float32)
    tgt_small = jax.random.randint(k2, (8,), 0, num_classes, dtype=jnp.int32)
    loss_small = jax.block_until_ready(ecoc_loss(out_small, tgt_small, num_classes))
    ref_small = jnp.sum((out_small - codebook[tgt_small]) ** 2)
    assert jnp.allclose(loss_small, ref_small, rtol=1e-5, atol=1e-4), (loss_small, ref_small)

    # Case 2: several parallel tiles + ragged tail; block_b=130 exercises the 128-rounding.
    out_big = jax.random.normal(k3, (300, num_classes - 1), dtype=jnp.float32)
    tgt_big = jax.random.randint(k4, (300,), 0, num_classes, dtype=jnp.int32)
    loss_big = jax.block_until_ready(ecoc_loss(out_big, tgt_big, num_classes, block_b=130))
    ref_big = jnp.sum((out_big - codebook[tgt_big]) ** 2)
    assert jnp.allclose(loss_big, ref_big, rtol=1e-5, atol=1e-3), (loss_big, ref_big)

    # Case 3: bf16 activations streamed in native dtype, f32 math in-kernel.
    out_bf16 = jax.random.normal(k5, (96, num_classes - 1),
                                 dtype=jnp.float32).astype(jnp.bfloat16)
    tgt_bf16 = jax.random.randint(k2, (96,), 0, num_classes, dtype=jnp.int32)
    loss_bf16 = jax.block_until_ready(ecoc_loss(out_bf16, tgt_bf16, num_classes))
    ref_bf16 = jnp.sum((out_bf16.astype(jnp.float32) - codebook[tgt_bf16]) ** 2)
    assert jnp.allclose(loss_bf16, ref_bf16, rtol=1e-4, atol=1e-3), (loss_bf16, ref_bf16)

    print("KERNEL_OK")
</pallas_src>

<mosaic_0001>
module attributes {stable_mosaic.version = 11 : i64} {
  func.func @_ecoc_partial_kernel(%arg0: i32, %arg1: memref<1x128xi32, #tpu.memory_space<vmem>>, %arg2: memref<9x128xf32, #tpu.memory_space<vmem>>, %arg3: memref<1x8x128xf32, #tpu.memory_space<vmem>>) attributes {dimension_semantics = [#tpu.dimension_semantics<parallel>], iteration_bounds = array<i64: 1>, scalar_prefetch = 0 : i64, scratch_operands = 0 : i64, tpu.core_type = #tpu.core_type<tc>, window_params = [{transform_indices = @transform_0, window_bounds = array<i64: 1, 128>}, {transform_indices = @transform_1, window_bounds = array<i64: 9, 128>}, {transform_indices = @transform_2, window_bounds = array<i64: 1, 8, 128>}]} {
    %c0 = arith.constant 0 : index
    %c0_0 = arith.constant 0 : index
    %0 = vector.load %arg2[%c0, %c0_0] : memref<9x128xf32, #tpu.memory_space<vmem>>, vector<9x128xf32>
    %c0_1 = arith.constant 0 : index
    %c0_2 = arith.constant 0 : index
    %1 = vector.load %arg1[%c0_1, %c0_2] : memref<1x128xi32, #tpu.memory_space<vmem>>, vector<1x128xi32>
    %2 = tpu.iota {dimensions = array<i32: 0>} : vector<9x128xi32>
    %3 = vector.broadcast %1 : vector<1x128xi32> to vector<9x128xi32>
    %4 = arith.cmpi slt, %2, %3 : vector<9x128xi32>
    %cst = arith.constant 1.000000e+00 : f32
    %5 = vector.broadcast %cst : f32 to vector<9x128xf32>
    %6 = arith.subf %0, %5 : vector<9x128xf32>
    %7 = arith.select %4, %6, %0 : vector<9x128xi1>, vector<9x128xf32>
    %c0_i32 = arith.constant 0 : i32
    %8 = arith.cmpi ne, %arg0, %c0_i32 : i32
    %9 = arith.extui %8 : i1 to i32
    %c0_i32_3 = arith.constant 0 : i32
    %10 = arith.cmpi ne, %9, %c0_i32_3 : i32
    scf.if %10 {
      %14 = arith.mulf %7, %7 : vector<9x128xf32>
      %15 = vector.shape_cast %14 : vector<9x128xf32> to vector<1x9x128xf32>
      %cst_6 = arith.constant dense<0.000000e+00> : vector<1xf32>
      %16 = vector.multi_reduction <add>, %15, %cst_6 [1, 2] : vector<1x9x128xf32> to vector<1xf32>
      %17 = vector.shape_cast %16 : vector<1xf32> to vector<1x1x1xf32>
      %18 = vector.extract %17[0, 0, 0] : f32 from vector<1x1x1xf32>
      %19 = vector.broadcast %18 : f32 to vector<1x8x128xf32>
      %c0_7 = arith.constant 0 : index
      %c0_8 = arith.constant 0 : index
      %c0_9 = arith.constant 0 : index
      %20 = vector.load %arg3[%c0_7, %c0_8, %c0_9] : memref<1x8x128xf32, #tpu.memory_space<vmem>>, vector<1x8x128xf32>
      tpu.vector_store %arg3[%c0_7, %c0_8, %c0_9], %19 {strides = array<i32>} : memref<1x8x128xf32, #tpu.memory_space<vmem>>, vector<1x8x128xf32>,
    } else {
    }
    %c0_i32_4 = arith.constant 0 : i32
    %11 = arith.cmpi eq, %arg0, %c0_i32_4 : i32
    %12 = arith.extui %11 : i1 to i32
    %c0_i32_5 = arith.constant 0 : i32
    %13 = arith.cmpi ne, %12, %c0_i32_5 : i32
    scf.if %13 {
      %14 = tpu.iota {dimensions = array<i32: 1>} : vector<9x128xi32>
      %c128_i32 = arith.constant 128 : i32
      %15 = arith.muli %arg0, %c128_i32 : i32
      %16 = vector.broadcast %15 : i32 to vector<9x128xi32>
      %17 = arith.addi %14, %16 : vector<9x128xi32>
      %c8_i32 = arith.constant 8 : i32
      %18 = vector.broadcast %c8_i32 : i32 to vector<9x128xi32>
      %19 = arith.cmpi slt, %17, %18 : vector<9x128xi32>
      %cst_6 = arith.constant 0.000000e+00 : f32
      %20 = vector.broadcast %cst_6 : f32 to vector<9x128xf32>
      %21 = arith.select %19, %7, %20 : vector<9x128xi1>, vector<9x128xf32>
      %22 = arith.mulf %21, %21 : vector<9x128xf32>
      %23 = vector.shape_cast %22 : vector<9x128xf32> to vector<1x9x128xf32>
      %cst_7 = arith.constant dense<0.000000e+00> : vector<1xf32>
      %24 = vector.multi_reduction <add>, %23, %cst_7 [1, 2] : vector<1x9x128xf32> to vector<1xf32>
      %25 = vector.shape_cast %24 : vector<1xf32> to vector<1x1x1xf32>
      %26 = vector.extract %25[0, 0, 0] : f32 from vector<1x1x1xf32>
      %27 = vector.broadcast %26 : f32 to vector<1x8x128xf32>
      %c0_8 = arith.constant 0 : index
      %c0_9 = arith.constant 0 : index
      %c0_10 = arith.constant 0 : index
      %28 = vector.load %arg3[%c0_8, %c0_9, %c0_10] : memref<1x8x128xf32, #tpu.memory_space<vmem>>, vector<1x8x128xf32>
      tpu.vector_store %arg3[%c0_8, %c0_9, %c0_10], %27 {strides = array<i32>} : memref<1x8x128xf32, #tpu.memory_space<vmem>>, vector<1x8x128xf32>,
    } else {
    }
    return
  }
  func.func @transform_0(%arg0: i32) -> (i32, i32) {
    %c0_i32 = arith.constant 0 : i32
    %c0_i32_0 = arith.constant 0 : i32
    return %c0_i32, %arg0 : i32, i32
  }
  func.func @transform_1(%arg0: i32) -> (i32, i32) {
    %c0_i32 = arith.constant 0 : i32
    %c0_i32_0 = arith.constant 0 : i32
    return %c0_i32, %arg0 : i32, i32
  }
  func.func @transform_2(%arg0: i32) -> (i32, i32, i32) {
    %c0_i32 = arith.constant 0 : i32
    %c0_i32_0 = arith.constant 0 : i32
    %c0_i32_1 = arith.constant 0 : i32
    return %arg0, %c0_i32, %c0_i32_0 : i32, i32, i32
  }
}

</mosaic_0001>

<llo_original>
// kernel: tpu_custom_call.1
$region0: #{tpu_custom_call.1}
  #allocation0 [shape = 'u32[]', space=smem, size = 0x4, offset = 0x4, fixed_abs, tag = 'smem constant byte address 0x4 - core index']
  #allocation1 [shape = 'u32[144,128]{1,0:T(1,128)}', space=vmem, size = 0x12000, scoped, tag = 'internal scratch']
  %s0 = inlined_call_operand.vmem [shape: s32[1,8], index: 0, kind: input, shape index: {}]
  %s1 = inlined_call_operand.vmem [shape: f32[9,8], index: 1, kind: input, shape index: {}]
  %s2 = inlined_call_operand.hbm [shape: f32[1,8,128], index: 2, kind: output, shape index: {}]
  %s3 = sld [smem:[#allocation0]]
  $region26: #{tpu_custom_call.1} parent=0
    _
  %s5 = ssub.s32 1, %s3
  %s6 = scalar_select 0, %s5, %s3
  $region1: #{tpu_custom_call.1} parent=0
    #allocation2 [shape = 'u8[4096]{0}', space=vmem, size = 0x1000, scoped, tag = 'output window, operand 0, single buffered']
    #allocation3 [shape = 's32[1]{0}', space=sflag, size = 0x4, scoped, tag = 'scoped memory for tpu_custom_call.1']
    %7 = vsyncpa [#allocation3], 0
    // Predicated region
    $region2: #{tpu_custom_call.1} parent=1 // pred_check
      _
    $region3: #{tpu_custom_call.1} parent=1 // pred_check_branch
      %9 = sbr.rel (0) target = $region5
    $region4: #{tpu_custom_call.1} parent=1 // pred_region
      _
    $region5: #{tpu_custom_call.1} parent=1 // pred_fallthru
      _
    // Predicated region
    $region6: #{tpu_custom_call.1} parent=1 // pred_check
      _
    $region7: #{tpu_custom_call.1} parent=1 // pred_check_branch
      %11 = sbr.rel (0) target = $region9
    $region8: #{tpu_custom_call.1} parent=1 // pred_region
      _
    $region9: #{tpu_custom_call.1} parent=1 // pred_fallthru
      _
    %v12 = vld [vmem:[%s1] sm:$0xff]
    %v13 = vld [vmem:[%s1 + $0x8] sm:$0x1]
    %v14 = vld [vmem:[%s0] sm:$0x1]
    %v15 = vlaneseq
    %v16 = vshrl.u32 %v15, 7
    %v17 = vadd.s32 %v16, 8
    %v18 = vlaneseq
    %v19 = vshrl.u32 %v18, 7
    %v20 = vsub.s32 0, %v19
    %v21 = vrot.slane %v14, %v20
    %vm22 = vcmp.lt.s32.totalorder %v16, %v21
    %vm23 = vcmp.lt.s32.totalorder %v17, %v21
    %v24 = vsub.f32 %v12, 1.0
    %v25 = vsub.f32 %v13, 1.0
    %v26 = vsel %vm22, %v24, %v12
    %v27 = vsel %vm23, %v25, %v13
    %p28 = scmp.ne.s32.totalorder 0, 0
    // Predicated region
    $region10: #{tpu_custom_call.1} parent=1 // pred_check
      %p29 = pneg %p28
    $region11: #{tpu_custom_call.1} parent=1 // pred_check_branch
      %31 = sbr.rel (%p29) target = $region13
    $region12: #{tpu_custom_call.1} parent=1 // pred_region
      %v32 = vmul.f32 %v26, %v26
      %v33 = vmul.f32 %v27, %v27
      %vm34 = vcmask 1040384
      %v35 = vsel %vm34, %v33, 0.0
      %v36 = vadd.f32 %v32, %v35
      %37 = vadd.xlane.f32.xlu0 %v36
      %v38 = vpop.xlane.xlu0 %37
      %v39 = vrot.slane %v38, 4
      %v40 = vadd.f32 %v38, %v39
      %v41 = vrot.slane %v40, 2
      %v42 = vadd.f32 %v40, %v41
      %v43 = vrot.slane %v42, 1
      %v44 = vadd.f32 %v42, %v43
      %s45 = vtos %v44
      %v46 = vstv %s45
      %47 = vst [vmem:[#allocation2] sm:$0xff] %v46
    $region13: #{tpu_custom_call.1} parent=1 // pred_fallthru
      _
    %p48 = scmp.eq.s32.totalorder 0, 0
    // Predicated region
    $region14: #{tpu_custom_call.1} parent=1 // pred_check
      %p49 = pneg %p48
    $region15: #{tpu_custom_call.1} parent=1 // pred_check_branch
      %51 = sbr.rel (%p49) target = $region17
    $region16: #{tpu_custom_call.1} parent=1 // pred_region
      %v52 = vlaneseq
      %v53 = vand.u32 %v52, 127
      %s54 = smul.u32 0, 128
      %v55 = vstv %s54
      %v56 = vadd.s32 %v53, %v55
      %vm57 = vcmp.lt.s32.totalorder %v56, 8
      %v58 = vsel %vm57, %v26, 0.0
      %v59 = vsel %vm57, %v27, 0.0
      %v60 = vmul.f32 %v58, %v58
      %v61 = vmul.f32 %v59, %v59
      %vm62 = vcmask 1040384
      %v63 = vsel %vm62, %v61, 0.0
      %v64 = vadd.f32 %v60, %v63
      %65 = vadd.xlane.f32.xlu0 %v64
      %v66 = vpop.xlane.xlu0 %65
      %v67 = vrot.slane %v66, 4
      %v68 = vadd.f32 %v66, %v67
      %v69 = vrot.slane %v68, 2
      %v70 = vadd.f32 %v68, %v69
      %v71 = vrot.slane %v70, 1
      %v72 = vadd.f32 %v70, %v71
      %s73 = vtos %v72
      %v74 = vstv %s73
      %75 = vst [vmem:[#allocation2] sm:$0xff] %v74
    $region17: #{tpu_custom_call.1} parent=1 // pred_fallthru
      _
    // Predicated region
    $region18: #{tpu_custom_call.1} parent=1 // pred_check
      _
    $region19: #{tpu_custom_call.1} parent=1 // pred_check_branch
      %77 = sbr.rel (0) target = $region21
    $region20: #{tpu_custom_call.1} parent=1 // pred_region
      %s79 = ssub.s32 128, 128
      %80 = vsyncadd [#allocation3], %s79
      %s82 = sshll.u32 [#allocation2], 4
      %s83 = int_to_ptr.vmem [resolvable:$true] %s82
      %85 = dma.vmem_to_hbm [thread:$0]  %s83, 128, %s2, [#allocation3]
    $region21: #{tpu_custom_call.1} parent=1 // pred_fallthru
      _
    // Predicated region
    $region22: #{tpu_custom_call.1} parent=1 // pred_check
      _
    $region23: #{tpu_custom_call.1} parent=1 // pred_check_branch
      %87 = sbr.rel (0) target = $region25
    $region24: #{tpu_custom_call.1} parent=1 // pred_region
      %88 = dma.done [#allocation3], 128
    $region25: #{tpu_custom_call.1} parent=1 // pred_fallthru
      _
    %89 = vsyncpa [#allocation3], 1

</llo_original>
